<compile_context>
chip_gen: v7x
topology: tpu7x:2x2x1
jax: 0.10.0
libtpu: 0.0.40
codegen_flags: <defaults>
</compile_context>

<pallas_src>
import jax
import jax.numpy as jnp
from jax.experimental import pallas as pl
from jax.experimental.pallas import tpu as pltpu


def _mlp_q_kernel(f_ref, a_ref, w1f_ref, w1a_ref, b1_ref, w2_ref, b2_ref,
                  w3_ref, b3_ref, o_ref):
    # Layer 1: fused concat -> split matmul (MXU, f32 accumulation) + ReLU.
    h1 = jnp.dot(f_ref[...], w1f_ref[...], preferred_element_type=jnp.float32)
    h1 = h1 + jnp.dot(a_ref[...], w1a_ref[...], preferred_element_type=jnp.float32)
    h1 = jnp.maximum(h1 + b1_ref[...], 0.0)
    # Layer 2: Linear(128 -> 128) + ReLU.
    h2 = jnp.dot(h1, w2_ref[...], preferred_element_type=jnp.float32)
    h2 = jnp.maximum(h2 + b2_ref[...], 0.0)
    # Layer 3: lane-contraction matmul (like Q·K^T): (8,128) x (TB,128)^T -> (8,TB).
    # All 8 rows of w3_ref hold the same 128-long weight row; keep row 0.
    out = jax.lax.dot_general(
        w3_ref[...], h2,
        dimension_numbers=(((1,), (1,)), ((), ())),
        preferred_element_type=jnp.float32)
    res = jnp.tanh(out[0:1, :] + b3_ref[0])            # (1, TB), lane-dense
    o_ref[...] = res.reshape(o_ref.shape).astype(o_ref.dtype)


def multilayer_q_forward(features, actions, params, *, block_b=256):
    """features: [B, Df], actions: [B, Da] with Df + Da == 12. Returns [B, 1]."""
    w1, b1, w2, b2, w3, b3 = params
    B, df = features.shape
    da = actions.shape[1]
    assert df + da == w1.shape[0]

    features = features.astype(jnp.float32)
    actions = actions.astype(jnp.float32)

    num_tiles = pl.cdiv(B, block_b)
    b_pad = num_tiles * block_b
    if b_pad != B:
        features = jnp.pad(features, ((0, b_pad - B), (0, 0)))
        actions = jnp.pad(actions, ((0, b_pad - B), (0, 0)))

    # Split W1 so the concat never materializes; broadcast W3's single output
    # column to 8 sublanes so the layer-3 matmul operand is tile-aligned.
    w1f = w1[:df, :]
    w1a = w1[df:, :]
    w3_row = jnp.broadcast_to(jnp.reshape(w3, (1, -1)), (8, w3.shape[0]))
    b3_s = jnp.reshape(b3, (1,))

    hidden = w1.shape[1]
    flops = 2 * b_pad * (df * hidden + da * hidden + hidden * hidden + hidden)
    bytes_accessed = (b_pad * (df + da + 1) * 4
                      + (w1.size + b1.size + w2.size + b2.size
                         + w3_row.size + 1) * 4)

    const2d = lambda i: (0, 0)

    out = pl.pallas_call(
        _mlp_q_kernel,
        out_shape=jax.ShapeDtypeStruct((num_tiles, 1, block_b), jnp.float32),
        grid=(num_tiles,),
        in_specs=[
            pl.BlockSpec((block_b, df), lambda i: (i, 0)),   # features tile
            pl.BlockSpec((block_b, da), lambda i: (i, 0)),   # actions tile
            pl.BlockSpec(w1f.shape, const2d),                # W1[:df]
            pl.BlockSpec(w1a.shape, const2d),                # W1[df:]
            pl.BlockSpec(b1.shape, const2d),                 # b1
            pl.BlockSpec(w2.shape, const2d),                 # W2
            pl.BlockSpec(b2.shape, const2d),                 # b2
            pl.BlockSpec(w3_row.shape, const2d),             # W3 row (broadcast to 8)
            pl.BlockSpec(memory_space=pltpu.MemorySpace.SMEM),  # b3 scalar
        ],
        out_specs=pl.BlockSpec((1, 1, block_b), lambda i: (i, 0, 0)),
        compiler_params=pltpu.CompilerParams(
            dimension_semantics=("parallel",),
            vmem_limit_bytes=16 << 20,
        ),
        cost_estimate=pl.CostEstimate(
            flops=flops, transcendentals=b_pad, bytes_accessed=bytes_accessed),
    )(features, actions, w1f, w1a, b1, w2, b2, w3_row, b3_s)

    return out.reshape(-1)[:B].reshape(B, 1)


def init_params(key):
    """Deterministic synthetic init matching nn.Linear shapes (stored transposed)."""
    ks = jax.random.split(key, 6)

    def linear(kw, kb, fan_in, fan_out):
        # mimic PyTorch's uniform(-1/sqrt(fan_in), 1/sqrt(fan_in)) init
        bound = 1.0 / jnp.sqrt(jnp.float32(fan_in))
        w = jax.random.uniform(kw, (fan_in, fan_out), jnp.float32, -bound, bound)
        b = jax.random.uniform(kb, (1, fan_out), jnp.float32, -bound, bound)
        return w, b

    w1, b1 = linear(ks[0], ks[1], 12, 128)
    w2, b2 = linear(ks[2], ks[3], 128, 128)
    w3, b3 = linear(ks[4], ks[5], 128, 1)
    return (w1, b1, w2, b2, w3, b3)


def reference_forward(features, actions, params):
    """Pure-JAX reference for correctness check (f32-precision matmuls)."""
    x = jnp.concatenate([features, actions], axis=1).astype(jnp.float32)
    w1, b1, w2, b2, w3, b3 = params
    hi = jax.lax.Precision.HIGHEST
    h1 = jnp.maximum(jnp.dot(x, w1, precision=hi) + b1, 0.0)
    h2 = jnp.maximum(jnp.dot(h1, w2, precision=hi) + b2, 0.0)
    return jnp.tanh(jnp.dot(h2, w3, precision=hi) + b3)


if __name__ == "__main__":
    key = jax.random.PRNGKey(0)
    k_feat, k_act, k_params = jax.random.split(key, 3)

    B = 8
    features = jax.random.normal(k_feat, (B, 10), jnp.float32)  # state features
    actions = jax.random.normal(k_act, (B, 2), jnp.float32)     # [steer, throttle]
    params = init_params(k_params)

    out = multilayer_q_forward(features, actions, params)
    out = jax.block_until_ready(out)

    ref = reference_forward(features, actions, params)
    assert out.shape == (B, 1), out.shape
    assert jnp.allclose(out, ref, atol=1e-5, rtol=1e-5), "mismatch vs reference"

    print("KERNEL_OK")
</pallas_src>

<mosaic_0001>
module attributes {stable_mosaic.version = 11 : i64} {
  func.func @_mlp_q_kernel(%arg0: i32, %arg1: memref<256x10xf32, #tpu.memory_space<vmem>>, %arg2: memref<256x2xf32, #tpu.memory_space<vmem>>, %arg3: memref<10x128xf32, #tpu.memory_space<vmem>>, %arg4: memref<2x128xf32, #tpu.memory_space<vmem>>, %arg5: memref<1x128xf32, #tpu.memory_space<vmem>>, %arg6: memref<128x128xf32, #tpu.memory_space<vmem>>, %arg7: memref<1x128xf32, #tpu.memory_space<vmem>>, %arg8: memref<8x128xf32, #tpu.memory_space<vmem>>, %arg9: memref<1xf32, #tpu.memory_space<smem>>, %arg10: memref<1x1x256xf32, #tpu.memory_space<vmem>>) attributes {dimension_semantics = [#tpu.dimension_semantics<parallel>], iteration_bounds = array<i64: 1>, scalar_prefetch = 0 : i64, scratch_operands = 0 : i64, tpu.core_type = #tpu.core_type<tc>, window_params = [{transform_indices = @transform_0, window_bounds = array<i64: 256, 10>}, {transform_indices = @transform_1, window_bounds = array<i64: 256, 2>}, {pipeline_mode = #tpu.pipeline_mode<synchronous>, transform_indices = @transform_2, window_bounds = array<i64: 10, 128>}, {pipeline_mode = #tpu.pipeline_mode<synchronous>, transform_indices = @transform_3, window_bounds = array<i64: 2, 128>}, {pipeline_mode = #tpu.pipeline_mode<synchronous>, transform_indices = @transform_4, window_bounds = array<i64: 1, 128>}, {pipeline_mode = #tpu.pipeline_mode<synchronous>, transform_indices = @transform_5, window_bounds = array<i64: 128, 128>}, {pipeline_mode = #tpu.pipeline_mode<synchronous>, transform_indices = @transform_6, window_bounds = array<i64: 1, 128>}, {pipeline_mode = #tpu.pipeline_mode<synchronous>, transform_indices = @transform_7, window_bounds = array<i64: 8, 128>}, {transform_indices = @transform_8, window_bounds = array<i64: 1>}, {transform_indices = @transform_9, window_bounds = array<i64: 1, 1, 256>}]} {
    %c0 = arith.constant 0 : index
    %c0_0 = arith.constant 0 : index
    %0 = vector.load %arg1[%c0, %c0_0] : memref<256x10xf32, #tpu.memory_space<vmem>>, vector<256x10xf32>
    %c0_1 = arith.constant 0 : index
    %c0_2 = arith.constant 0 : index
    %1 = vector.load %arg3[%c0_1, %c0_2] : memref<10x128xf32, #tpu.memory_space<vmem>>, vector<10x128xf32>
    %cst = arith.constant dense<0.000000e+00> : vector<256x128xf32>
    %2 = tpu.matmul %0, %1, %cst {dimension_numbers = #tpu.dot_dimension_numbers<[1], [0], [0], [1], [0, 0, 1, 1], [], []>} : vector<256x10xf32>, vector<10x128xf32>, vector<256x128xf32> -> vector<256x128xf32>
    %c0_3 = arith.constant 0 : index
    %c0_4 = arith.constant 0 : index
    %3 = vector.load %arg2[%c0_3, %c0_4] : memref<256x2xf32, #tpu.memory_space<vmem>>, vector<256x2xf32>
    %c0_5 = arith.constant 0 : index
    %c0_6 = arith.constant 0 : index
    %4 = vector.load %arg4[%c0_5, %c0_6] : memref<2x128xf32, #tpu.memory_space<vmem>>, vector<2x128xf32>
    %cst_7 = arith.constant dense<0.000000e+00> : vector<256x128xf32>
    %5 = tpu.matmul %3, %4, %cst_7 {dimension_numbers = #tpu.dot_dimension_numbers<[1], [0], [0], [1], [0, 0, 1, 1], [], []>} : vector<256x2xf32>, vector<2x128xf32>, vector<256x128xf32> -> vector<256x128xf32>
    %6 = arith.addf %2, %5 : vector<256x128xf32>
    %c0_8 = arith.constant 0 : index
    %c0_9 = arith.constant 0 : index
    %7 = vector.load %arg5[%c0_8, %c0_9] : memref<1x128xf32, #tpu.memory_space<vmem>>, vector<1x128xf32>
    %8 = vector.broadcast %7 : vector<1x128xf32> to vector<256x128xf32>
    %9 = arith.addf %6, %8 : vector<256x128xf32>
    %cst_10 = arith.constant 0.000000e+00 : f32
    %10 = vector.broadcast %cst_10 : f32 to vector<256x128xf32>
    %11 = arith.maximumf %9, %10 : vector<256x128xf32>
    %c0_11 = arith.constant 0 : index
    %c0_12 = arith.constant 0 : index
    %12 = vector.load %arg6[%c0_11, %c0_12] : memref<128x128xf32, #tpu.memory_space<vmem>>, vector<128x128xf32>
    %cst_13 = arith.constant dense<0.000000e+00> : vector<256x128xf32>
    %13 = tpu.matmul %11, %12, %cst_13 {dimension_numbers = #tpu.dot_dimension_numbers<[1], [0], [0], [1], [0, 0, 1, 1], [], []>} : vector<256x128xf32>, vector<128x128xf32>, vector<256x128xf32> -> vector<256x128xf32>
    %c0_14 = arith.constant 0 : index
    %c0_15 = arith.constant 0 : index
    %14 = vector.load %arg7[%c0_14, %c0_15] : memref<1x128xf32, #tpu.memory_space<vmem>>, vector<1x128xf32>
    %15 = vector.broadcast %14 : vector<1x128xf32> to vector<256x128xf32>
    %16 = arith.addf %13, %15 : vector<256x128xf32>
    %cst_16 = arith.constant 0.000000e+00 : f32
    %17 = vector.broadcast %cst_16 : f32 to vector<256x128xf32>
    %18 = arith.maximumf %16, %17 : vector<256x128xf32>
    %c0_17 = arith.constant 0 : index
    %c0_18 = arith.constant 0 : index
    %19 = vector.load %arg8[%c0_17, %c0_18] : memref<8x128xf32, #tpu.memory_space<vmem>>, vector<8x128xf32>
    %cst_19 = arith.constant dense<0.000000e+00> : vector<8x256xf32>
    %20 = tpu.matmul %19, %18, %cst_19 {dimension_numbers = #tpu.dot_dimension_numbers<[1], [1], [0], [0], [0, 0, 1, 0], [], []>} : vector<8x128xf32>, vector<256x128xf32>, vector<8x256xf32> -> vector<8x256xf32>
    %21 = vector.extract_strided_slice %20 {offsets = [0, 0], sizes = [1, 256], strides = [1, 1]} : vector<8x256xf32> to vector<1x256xf32>
    %c0_20 = arith.constant 0 : index
    %22 = memref.load %arg9[%c0_20] : memref<1xf32, #tpu.memory_space<smem>>
    %23 = vector.broadcast %22 : f32 to vector<1x256xf32>
    %24 = arith.addf %21, %23 : vector<1x256xf32>
    %25 = math.tanh %24 : vector<1x256xf32>
    %26 = vector.shape_cast %25 : vector<1x256xf32> to vector<1x1x256xf32>
    %c0_21 = arith.constant 0 : index
    %c0_22 = arith.constant 0 : index
    %c0_23 = arith.constant 0 : index
    %27 = vector.load %arg10[%c0_21, %c0_22, %c0_23] : memref<1x1x256xf32, #tpu.memory_space<vmem>>, vector<1x1x256xf32>
    tpu.vector_store %arg10[%c0_21, %c0_22, %c0_23], %26 {strides = array<i32>} : memref<1x1x256xf32, #tpu.memory_space<vmem>>, vector<1x1x256xf32>,
    return
  }
  func.func @transform_0(%arg0: i32) -> (i32, i32) {
    %c0_i32 = arith.constant 0 : i32
    %c0_i32_0 = arith.constant 0 : i32
    return %arg0, %c0_i32 : i32, i32
  }
  func.func @transform_1(%arg0: i32) -> (i32, i32) {
    %c0_i32 = arith.constant 0 : i32
    %c0_i32_0 = arith.constant 0 : i32
    return %arg0, %c0_i32 : i32, i32
  }
  func.func @transform_2(%arg0: i32) -> (i32, i32) {
    %c0_i32 = arith.constant 0 : i32
    %c0_i32_0 = arith.constant 0 : i32
    %c0_i32_1 = arith.constant 0 : i32
    return %c0_i32, %c0_i32_0 : i32, i32
  }
  func.func @transform_3(%arg0: i32) -> (i32, i32) {
    %c0_i32 = arith.constant 0 : i32
    %c0_i32_0 = arith.constant 0 : i32
    %c0_i32_1 = arith.constant 0 : i32
    return %c0_i32, %c0_i32_0 : i32, i32
  }
  func.func @transform_4(%arg0: i32) -> (i32, i32) {
    %c0_i32 = arith.constant 0 : i32
    %c0_i32_0 = arith.constant 0 : i32
    %c0_i32_1 = arith.constant 0 : i32
    return %c0_i32, %c0_i32_0 : i32, i32
  }
  func.func @transform_5(%arg0: i32) -> (i32, i32) {
    %c0_i32 = arith.constant 0 : i32
    %c0_i32_0 = arith.constant 0 : i32
    %c0_i32_1 = arith.constant 0 : i32
    return %c0_i32, %c0_i32_0 : i32, i32
  }
  func.func @transform_6(%arg0: i32) -> (i32, i32) {
    %c0_i32 = arith.constant 0 : i32
    %c0_i32_0 = arith.constant 0 : i32
    %c0_i32_1 = arith.constant 0 : i32
    return %c0_i32, %c0_i32_0 : i32, i32
  }
  func.func @transform_7(%arg0: i32) -> (i32, i32) {
    %c0_i32 = arith.constant 0 : i32
    %c0_i32_0 = arith.constant 0 : i32
    %c0_i32_1 = arith.constant 0 : i32
    return %c0_i32, %c0_i32_0 : i32, i32
  }
  func.func @transform_8(%arg0: i32) -> i32 {
    %c0_i32 = arith.constant 0 : i32
    %c0_i32_0 = arith.constant 0 : i32
    return %c0_i32 : i32
  }
  func.func @transform_9(%arg0: i32) -> (i32, i32, i32) {
    %c0_i32 = arith.constant 0 : i32
    %c0_i32_0 = arith.constant 0 : i32
    %c0_i32_1 = arith.constant 0 : i32
    return %arg0, %c0_i32, %c0_i32_0 : i32, i32, i32
  }
}

</mosaic_0001>

<llo_original>
// kernel: tpu_custom_call.1
$region0: #{tpu_custom_call.1}
  #allocation0 [shape = 'u32[]', space=smem, size = 0x4, offset = 0x4, fixed_abs, tag = 'smem constant byte address 0x4 - core index']
  #allocation1 [shape = 'u32[144,128]{1,0:T(1,128)}', space=vmem, size = 0x12000, scoped, tag = 'internal scratch']
  #allocation2 [shape = 'f32[1]{0:T(128)S(6)}', space=smem, size = 0x200, scoped, tag = 'scoped memory for tpu_custom_call.1']
  %s0 = inlined_call_operand.vmem [shape: f32[256,10], index: 0, kind: input, shape index: {}]
  %s1 = inlined_call_operand.vmem [shape: f32[256,2], index: 1, kind: input, shape index: {}]
  %s2 = inlined_call_operand.vmem [shape: f32[10,128], index: 2, kind: input, shape index: {}]
  %s3 = inlined_call_operand.vmem [shape: f32[2,128], index: 3, kind: input, shape index: {}]
  %s4 = inlined_call_operand.vmem [shape: f32[1,128], index: 4, kind: input, shape index: {}]
  %s5 = inlined_call_operand.vmem [shape: f32[128,128], index: 5, kind: input, shape index: {}]
  %s6 = inlined_call_operand.vmem [shape: f32[1,128], index: 6, kind: input, shape index: {}]
  %s7 = inlined_call_operand.vmem [shape: f32[8,128], index: 7, kind: input, shape index: {}]
  %s8 = inlined_call_operand.<no memory space> [shape: f32[1], index: 8, kind: input, shape index: {}]
  %s9 = inlined_call_operand.hbm [shape: f32[1,1,256], index: 9, kind: output, shape index: {}]
  %s10 = sld [smem:[#allocation0]]
  $region46: #{tpu_custom_call.1} parent=0
    _
  %s12 = ssub.s32 1, %s10
  %s13 = scalar_select 0, %s12, %s10
  %14 = sst [smem:[#allocation2]] %s8
  $region1: #{tpu_custom_call.1} parent=0
    #allocation3 [shape = 'u8[1024]{0}', space=vmem, size = 0x400, scoped, tag = 'output window, operand 0, single buffered']
    #allocation4 [shape = 's32[1]{0}', space=sflag, size = 0x4, scoped, tag = 'scoped memory for tpu_custom_call.1']
    %15 = vsyncpa [#allocation4], 0
    // Predicated region
    $region2: #{tpu_custom_call.1} parent=1 // pred_check
      _
    $region3: #{tpu_custom_call.1} parent=1 // pred_check_branch
      %17 = sbr.rel (0) target = $region5
    $region4: #{tpu_custom_call.1} parent=1 // pred_region
      _
    $region5: #{tpu_custom_call.1} parent=1 // pred_fallthru
      _
    // Predicated region
    $region6: #{tpu_custom_call.1} parent=1 // pred_check
      _
    $region7: #{tpu_custom_call.1} parent=1 // pred_check_branch
      %19 = sbr.rel (0) target = $region9
    $region8: #{tpu_custom_call.1} parent=1 // pred_region
      _
    $region9: #{tpu_custom_call.1} parent=1 // pred_fallthru
      _
    // Predicated region
    $region10: #{tpu_custom_call.1} parent=1 // pred_check
      _
    $region11: #{tpu_custom_call.1} parent=1 // pred_check_branch
      %21 = sbr.rel (0) target = $region13
    $region12: #{tpu_custom_call.1} parent=1 // pred_region
      _
    $region13: #{tpu_custom_call.1} parent=1 // pred_fallthru
      _
    // Predicated region
    $region14: #{tpu_custom_call.1} parent=1 // pred_check
      _
    $region15: #{tpu_custom_call.1} parent=1 // pred_check_branch
      %23 = sbr.rel (0) target = $region17
    $region16: #{tpu_custom_call.1} parent=1 // pred_region
      _
    $region17: #{tpu_custom_call.1} parent=1 // pred_fallthru
      _
    // Predicated region
    $region18: #{tpu_custom_call.1} parent=1 // pred_check
      _
    $region19: #{tpu_custom_call.1} parent=1 // pred_check_branch
      %25 = sbr.rel (0) target = $region21
    $region20: #{tpu_custom_call.1} parent=1 // pred_region
      _
    $region21: #{tpu_custom_call.1} parent=1 // pred_fallthru
      _
    // Predicated region
    $region22: #{tpu_custom_call.1} parent=1 // pred_check
      _
    $region23: #{tpu_custom_call.1} parent=1 // pred_check_branch
      %27 = sbr.rel (0) target = $region25
    $region24: #{tpu_custom_call.1} parent=1 // pred_region
      _
    $region25: #{tpu_custom_call.1} parent=1 // pred_fallthru
      _
    // Predicated region
    $region26: #{tpu_custom_call.1} parent=1 // pred_check
      _
    $region27: #{tpu_custom_call.1} parent=1 // pred_check_branch
      %29 = sbr.rel (0) target = $region29
    $region28: #{tpu_custom_call.1} parent=1 // pred_region
      _
    $region29: #{tpu_custom_call.1} parent=1 // pred_fallthru
      _
    // Predicated region
    $region30: #{tpu_custom_call.1} parent=1 // pred_check
      _
    $region31: #{tpu_custom_call.1} parent=1 // pred_check_branch
      %31 = sbr.rel (0) target = $region33
    $region32: #{tpu_custom_call.1} parent=1 // pred_region
      _
    $region33: #{tpu_custom_call.1} parent=1 // pred_fallthru
      _
    // Predicated region
    $region34: #{tpu_custom_call.1} parent=1 // pred_check
      _
    $region35: #{tpu_custom_call.1} parent=1 // pred_check_branch
      %33 = sbr.rel (0) target = $region37
    $region36: #{tpu_custom_call.1} parent=1 // pred_region
      _
    $region37: #{tpu_custom_call.1} parent=1 // pred_fallthru
      _
    %v34 = vld [vmem:[%s0] sm:$0xff]
    %v35 = vld [vmem:[%s0 + $0x8] sm:$0xff]
    %v36 = vld [vmem:[%s0 + $0x10] sm:$0xff]
    %v37 = vld [vmem:[%s0 + $0x18] sm:$0xff]
    %v38 = vld [vmem:[%s0 + $0x20] sm:$0xff]
    %v39 = vld [vmem:[%s0 + $0x28] sm:$0xff]
    %v40 = vld [vmem:[%s0 + $0x30] sm:$0xff]
    %v41 = vld [vmem:[%s0 + $0x38] sm:$0xff]
    %v42 = vld [vmem:[%s0 + $0x40] sm:$0xff]
    %v43 = vld [vmem:[%s0 + $0x48] sm:$0xff]
    %v44 = vld [vmem:[%s0 + $0x50] sm:$0xff]
    %v45 = vld [vmem:[%s0 + $0x58] sm:$0xff]
    %v46 = vld [vmem:[%s0 + $0x60] sm:$0xff]
    %v47 = vld [vmem:[%s0 + $0x68] sm:$0xff]
    %v48 = vld [vmem:[%s0 + $0x70] sm:$0xff]
    %v49 = vld [vmem:[%s0 + $0x78] sm:$0xff]
    %v50 = vld [vmem:[%s0 + $0x80] sm:$0xff]
    %v51 = vld [vmem:[%s0 + $0x88] sm:$0xff]
    %v52 = vld [vmem:[%s0 + $0x90] sm:$0xff]
    %v53 = vld [vmem:[%s0 + $0x98] sm:$0xff]
    %v54 = vld [vmem:[%s0 + $0xa0] sm:$0xff]
    %v55 = vld [vmem:[%s0 + $0xa8] sm:$0xff]
    %v56 = vld [vmem:[%s0 + $0xb0] sm:$0xff]
    %v57 = vld [vmem:[%s0 + $0xb8] sm:$0xff]
    %v58 = vld [vmem:[%s0 + $0xc0] sm:$0xff]
    %v59 = vld [vmem:[%s0 + $0xc8] sm:$0xff]
    %v60 = vld [vmem:[%s0 + $0xd0] sm:$0xff]
    %v61 = vld [vmem:[%s0 + $0xd8] sm:$0xff]
    %v62 = vld [vmem:[%s0 + $0xe0] sm:$0xff]
    %v63 = vld [vmem:[%s0 + $0xe8] sm:$0xff]
    %v64 = vld [vmem:[%s0 + $0xf0] sm:$0xff]
    %v65 = vld [vmem:[%s0 + $0xf8] sm:$0xff]
    %v66 = vld [vmem:[%s2] sm:$0xff]
    %v67 = vld [vmem:[%s2 + $0x8] sm:$0x3]
    %v68 = vld [vmem:[%s1] sm:$0xff]
    %v69 = vld [vmem:[%s1 + $0x8] sm:$0xff]
    %v70 = vld [vmem:[%s1 + $0x10] sm:$0xff]
    %v71 = vld [vmem:[%s1 + $0x18] sm:$0xff]
    %v72 = vld [vmem:[%s1 + $0x20] sm:$0xff]
    %v73 = vld [vmem:[%s1 + $0x28] sm:$0xff]
    %v74 = vld [vmem:[%s1 + $0x30] sm:$0xff]
    %v75 = vld [vmem:[%s1 + $0x38] sm:$0xff]
    %v76 = vld [vmem:[%s1 + $0x40] sm:$0xff]
    %v77 = vld [vmem:[%s1 + $0x48] sm:$0xff]
    %v78 = vld [vmem:[%s1 + $0x50] sm:$0xff]
    %v79 = vld [vmem:[%s1 + $0x58] sm:$0xff]
    %v80 = vld [vmem:[%s1 + $0x60] sm:$0xff]
    %v81 = vld [vmem:[%s1 + $0x68] sm:$0xff]
    %v82 = vld [vmem:[%s1 + $0x70] sm:$0xff]
    %v83 = vld [vmem:[%s1 + $0x78] sm:$0xff]
    %v84 = vld [vmem:[%s1 + $0x80] sm:$0xff]
    %v85 = vld [vmem:[%s1 + $0x88] sm:$0xff]
    %v86 = vld [vmem:[%s1 + $0x90] sm:$0xff]
    %v87 = vld [vmem:[%s1 + $0x98] sm:$0xff]
    %v88 = vld [vmem:[%s1 + $0xa0] sm:$0xff]
    %v89 = vld [vmem:[%s1 + $0xa8] sm:$0xff]
    %v90 = vld [vmem:[%s1 + $0xb0] sm:$0xff]
    %v91 = vld [vmem:[%s1 + $0xb8] sm:$0xff]
    %v92 = vld [vmem:[%s1 + $0xc0] sm:$0xff]
    %v93 = vld [vmem:[%s1 + $0xc8] sm:$0xff]
    %v94 = vld [vmem:[%s1 + $0xd0] sm:$0xff]
    %v95 = vld [vmem:[%s1 + $0xd8] sm:$0xff]
    %v96 = vld [vmem:[%s1 + $0xe0] sm:$0xff]
    %v97 = vld [vmem:[%s1 + $0xe8] sm:$0xff]
    %v98 = vld [vmem:[%s1 + $0xf0] sm:$0xff]
    %v99 = vld [vmem:[%s1 + $0xf8] sm:$0xff]
    %v100 = vld [vmem:[%s3] sm:$0x3]
    %vm101 = vcmask 15360
    %v103 = vsel %vm101, %v68, 0
    %v106 = vsel %vm101, %v69, 0
    %v109 = vsel %vm101, %v70, 0
    %v112 = vsel %vm101, %v71, 0
    %v115 = vsel %vm101, %v72, 0
    %v118 = vsel %vm101, %v73, 0
    %v121 = vsel %vm101, %v74, 0
    %v124 = vsel %vm101, %v75, 0
    %v127 = vsel %vm101, %v76, 0
    %v130 = vsel %vm101, %v77, 0
    %v133 = vsel %vm101, %v78, 0
    %v136 = vsel %vm101, %v79, 0
    %v139 = vsel %vm101, %v80, 0
    %v142 = vsel %vm101, %v81, 0
    %v145 = vsel %vm101, %v82, 0
    %v148 = vsel %vm101, %v83, 0
    %v151 = vsel %vm101, %v84, 0
    %v154 = vsel %vm101, %v85, 0
    %v157 = vsel %vm101, %v86, 0
    %v160 = vsel %vm101, %v87, 0
    %v163 = vsel %vm101, %v88, 0
    %v166 = vsel %vm101, %v89, 0
    %v169 = vsel %vm101, %v90, 0
    %v172 = vsel %vm101, %v91, 0
    %v175 = vsel %vm101, %v92, 0
    %v178 = vsel %vm101, %v93, 0
    %v181 = vsel %vm101, %v94, 0
    %v184 = vsel %vm101, %v95, 0
    %v187 = vsel %vm101, %v96, 0
    %v190 = vsel %vm101, %v97, 0
    %v193 = vsel %vm101, %v98, 0
    %v196 = vsel %vm101, %v99, 0
    %vm198 = vcmask 1041408
    %v200 = vsel %vm198, %v100, 0
    %202 = vmatprep.subr.mxu0 0.0
    %203 = vmatpush1.msra.mxu0 %v200
    %204 = vmatprep.subr.mxu0 0.0
    %205 = vmatpush1.msra.mxu0 0.0
    %206 = vmatprep.subr.mxu0 0.0
    %207 = vmatpush1.msra.mxu0 0.0
    %208 = vmatprep.subr.mxu0 0.0
    %209 = vmatpush1.msra.mxu0 0.0
    %210 = vmatprep.subr.mxu0 0.0
    %211 = vmatpush1.msra.mxu0 0.0
    %212 = vmatprep.subr.mxu0 0.0
    %213 = vmatpush1.msra.mxu0 0.0
    %214 = vmatprep.subr.mxu0 0.0
    %215 = vmatpush1.msra.mxu0 0.0
    %216 = vmatprep.subr.mxu0 0.0
    %217 = vmatpush1.msra.mxu0 0.0
    %218 = vmatprep.subr.mxu0 0.0
    %219 = vmatpush1.msra.mxu0 0.0
    %220 = vmatprep.subr.mxu0 0.0
    %221 = vmatpush1.msra.mxu0 0.0
    %222 = vmatprep.subr.mxu0 0.0
    %223 = vmatpush1.msra.mxu0 0.0
    %224 = vmatprep.subr.mxu0 0.0
    %225 = vmatpush1.msra.mxu0 0.0
    %226 = vmatprep.subr.mxu0 0.0
    %227 = vmatpush1.msra.mxu0 0.0
    %228 = vmatprep.subr.mxu0 0.0
    %229 = vmatpush1.msra.mxu0 0.0
    %230 = vmatprep.subr.mxu0 0.0
    %231 = vmatpush1.msra.mxu0 0.0
    %232 = vmatprep.subr.mxu0 0.0
    %233 = vmatpush1.msra.mxu0 0.0
    %234 = vmatprep.subr.mxu0 0.0
    %235 = vmatpush1.msra.mxu0 0.0
    %236 = vmatprep.subr.mxu0 0.0
    %237 = vmatpush1.msra.mxu0 0.0
    %238 = vmatprep.subr.mxu0 0.0
    %239 = vmatpush1.msra.mxu0 0.0
    %240 = vmatprep.subr.mxu0 0.0
    %241 = vmatpush1.msra.mxu0 0.0
    %242 = vmatprep.subr.mxu0 0.0
    %243 = vmatpush1.msra.mxu0 0.0
    %244 = vmatprep.subr.mxu0 0.0
    %245 = vmatpush1.msra.mxu0 0.0
    %246 = vmatprep.subr.mxu0 0.0
    %247 = vmatpush1.msra.mxu0 0.0
    %248 = vmatprep.subr.mxu0 0.0
    %249 = vmatpush1.msra.mxu0 0.0
    %250 = vmatprep.subr.mxu0 0.0
    %251 = vmatpush1.msra.mxu0 0.0
    %252 = vmatprep.subr.mxu0 0.0
    %253 = vmatpush1.msra.mxu0 0.0
    %254 = vmatprep.subr.mxu0 0.0
    %255 = vmatpush1.msra.mxu0 0.0
    %256 = vmatprep.subr.mxu0 0.0
    %257 = vmatpush1.msra.mxu0 0.0
    %258 = vmatprep.subr.mxu0 0.0
    %259 = vmatpush1.msra.mxu0 0.0
    %260 = vmatprep.subr.mxu0 0.0
    %261 = vmatpush1.msra.mxu0 0.0
    %262 = vmatprep.subr.mxu0 0.0
    %263 = vmatpush1.msra.mxu0 0.0
    %264 = vmatprep.subr.mxu0 0.0
    %265 = vmatpush1.msra.mxu0 0.0
    %266 = vmatprep.mubr.f32.mxu0 0.0
    %267 = vmatmul.mubr.f32.gmra.mrb[0].mxu0 %v103
    %v268 = vpop.f32.mrb[0].mxu0
    %v269 = vadd.f32 0.0, %v268
    %v270 = vpop.f32.mrb[0].mxu0
    %271 = vmatprep.mubr.f32.mxu0 0.0
    %272 = vmatmul.mubr.f32.gmra.mrb[0].mxu0 %v106
    %v273 = vpop.f32.mrb[0].mxu0
    %v274 = vadd.f32 0.0, %v273
    %v275 = vpop.f32.mrb[0].mxu0
    %276 = vmatprep.mubr.f32.mxu0 0.0
    %277 = vmatmul.mubr.f32.gmra.mrb[0].mxu0 %v109
    %v278 = vpop.f32.mrb[0].mxu0
    %v279 = vadd.f32 0.0, %v278
    %v280 = vpop.f32.mrb[0].mxu0
    %281 = vmatprep.mubr.f32.mxu0 0.0
    %282 = vmatmul.mubr.f32.gmra.mrb[0].mxu0 %v112
    %v283 = vpop.f32.mrb[0].mxu0
    %v284 = vadd.f32 0.0, %v283
    %v285 = vpop.f32.mrb[0].mxu0
    %286 = vmatprep.mubr.f32.mxu0 0.0
    %287 = vmatmul.mubr.f32.gmra.mrb[0].mxu0 %v115
    %v288 = vpop.f32.mrb[0].mxu0
    %v289 = vadd.f32 0.0, %v288
    %v290 = vpop.f32.mrb[0].mxu0
    %291 = vmatprep.mubr.f32.mxu0 0.0
    %292 = vmatmul.mubr.f32.gmra.mrb[0].mxu0 %v118
    %v293 = vpop.f32.mrb[0].mxu0
    %v294 = vadd.f32 0.0, %v293
    %v295 = vpop.f32.mrb[0].mxu0
    %296 = vmatprep.mubr.f32.mxu0 0.0
    %297 = vmatmul.mubr.f32.gmra.mrb[0].mxu0 %v121
    %v298 = vpop.f32.mrb[0].mxu0
    %v299 = vadd.f32 0.0, %v298
    %v300 = vpop.f32.mrb[0].mxu0
    %301 = vmatprep.mubr.f32.mxu0 0.0
    %302 = vmatmul.mubr.f32.gmra.mrb[0].mxu0 %v124
    %v303 = vpop.f32.mrb[0].mxu0
    %v304 = vadd.f32 0.0, %v303
    %v305 = vpop.f32.mrb[0].mxu0
    %306 = vmatprep.mubr.f32.mxu0 0.0
    %307 = vmatmul.mubr.f32.gmra.mrb[0].mxu0 %v127
    %v308 = vpop.f32.mrb[0].mxu0
    %v309 = vadd.f32 0.0, %v308
    %v310 = vpop.f32.mrb[0].mxu0
    %311 = vmatprep.mubr.f32.mxu0 0.0
    %312 = vmatmul.mubr.f32.gmra.mrb[0].mxu0 %v130
    %v313 = vpop.f32.mrb[0].mxu0
    %v314 = vadd.f32 0.0, %v313
    %v315 = vpop.f32.mrb[0].mxu0
    %316 = vmatprep.mubr.f32.mxu0 0.0
    %317 = vmatmul.mubr.f32.gmra.mrb[0].mxu0 %v133
    %v318 = vpop.f32.mrb[0].mxu0
    %v319 = vadd.f32 0.0, %v318
    %v320 = vpop.f32.mrb[0].mxu0
    %321 = vmatprep.mubr.f32.mxu0 0.0
    %322 = vmatmul.mubr.f32.gmra.mrb[0].mxu0 %v136
    %v323 = vpop.f32.mrb[0].mxu0
    %v324 = vadd.f32 0.0, %v323
    %v325 = vpop.f32.mrb[0].mxu0
    %326 = vmatprep.mubr.f32.mxu0 0.0
    %327 = vmatmul.mubr.f32.gmra.mrb[0].mxu0 %v139
    %v328 = vpop.f32.mrb[0].mxu0
    %v329 = vadd.f32 0.0, %v328
    %v330 = vpop.f32.mrb[0].mxu0
    %331 = vmatprep.mubr.f32.mxu0 0.0
    %332 = vmatmul.mubr.f32.gmra.mrb[0].mxu0 %v142
    %v333 = vpop.f32.mrb[0].mxu0
    %v334 = vadd.f32 0.0, %v333
    %v335 = vpop.f32.mrb[0].mxu0
    %336 = vmatprep.mubr.f32.mxu0 0.0
    %337 = vmatmul.mubr.f32.gmra.mrb[0].mxu0 %v145
    %v338 = vpop.f32.mrb[0].mxu0
    %v339 = vadd.f32 0.0, %v338
    %v340 = vpop.f32.mrb[0].mxu0
    %341 = vmatprep.mubr.f32.mxu0 0.0
    %342 = vmatmul.mubr.f32.gmra.mrb[0].mxu0 %v148
    %v343 = vpop.f32.mrb[0].mxu0
    %v344 = vadd.f32 0.0, %v343
    %v345 = vpop.f32.mrb[0].mxu0
    %346 = vmatprep.mubr.f32.mxu0 0.0
    %347 = vmatmul.mubr.f32.gmra.mrb[0].mxu0 %v151
    %v348 = vpop.f32.mrb[0].mxu0
    %v349 = vadd.f32 0.0, %v348
    %v350 = vpop.f32.mrb[0].mxu0
    %351 = vmatprep.mubr.f32.mxu0 0.0
    %352 = vmatmul.mubr.f32.gmra.mrb[0].mxu0 %v154
    %v353 = vpop.f32.mrb[0].mxu0
    %v354 = vadd.f32 0.0, %v353
    %v355 = vpop.f32.mrb[0].mxu0
    %356 = vmatprep.mubr.f32.mxu0 0.0
    %357 = vmatmul.mubr.f32.gmra.mrb[0].mxu0 %v157
    %v358 = vpop.f32.mrb[0].mxu0
    %v359 = vadd.f32 0.0, %v358
    %v360 = vpop.f32.mrb[0].mxu0
    %361 = vmatprep.mubr.f32.mxu0 0.0
    %362 = vmatmul.mubr.f32.gmra.mrb[0].mxu0 %v160
    %v363 = vpop.f32.mrb[0].mxu0
    %v364 = vadd.f32 0.0, %v363
    %v365 = vpop.f32.mrb[0].mxu0
    %366 = vmatprep.mubr.f32.mxu0 0.0
    %367 = vmatmul.mubr.f32.gmra.mrb[0].mxu0 %v163
    %v368 = vpop.f32.mrb[0].mxu0
    %v369 = vadd.f32 0.0, %v368
    %v370 = vpop.f32.mrb[0].mxu0
    %371 = vmatprep.mubr.f32.mxu0 0.0
    %372 = vmatmul.mubr.f32.gmra.mrb[0].mxu0 %v166
    %v373 = vpop.f32.mrb[0].mxu0
    %v374 = vadd.f32 0.0, %v373
    %v375 = vpop.f32.mrb[0].mxu0
    %376 = vmatprep.mubr.f32.mxu0 0.0
    %377 = vmatmul.mubr.f32.gmra.mrb[0].mxu0 %v169
    %v378 = vpop.f32.mrb[0].mxu0
    %v379 = vadd.f32 0.0, %v378
    %v380 = vpop.f32.mrb[0].mxu0
    %381 = vmatprep.mubr.f32.mxu0 0.0
    %382 = vmatmul.mubr.f32.gmra.mrb[0].mxu0 %v172
    %v383 = vpop.f32.mrb[0].mxu0
    %v384 = vadd.f32 0.0, %v383
    %v385 = vpop.f32.mrb[0].mxu0
    %386 = vmatprep.mubr.f32.mxu0 0.0
    %387 = vmatmul.mubr.f32.gmra.mrb[0].mxu0 %v175
    %v388 = vpop.f32.mrb[0].mxu0
    %v389 = vadd.f32 0.0, %v388
    %v390 = vpop.f32.mrb[0].mxu0
    %391 = vmatprep.mubr.f32.mxu0 0.0
    %392 = vmatmul.mubr.f32.gmra.mrb[0].mxu0 %v178
    %v393 = vpop.f32.mrb[0].mxu0
    %v394 = vadd.f32 0.0, %v393
    %v395 = vpop.f32.mrb[0].mxu0
    %396 = vmatprep.mubr.f32.mxu0 0.0
    %397 = vmatmul.mubr.f32.gmra.mrb[0].mxu0 %v181
    %v398 = vpop.f32.mrb[0].mxu0
    %v399 = vadd.f32 0.0, %v398
    %v400 = vpop.f32.mrb[0].mxu0
    %401 = vmatprep.mubr.f32.mxu0 0.0
    %402 = vmatmul.mubr.f32.gmra.mrb[0].mxu0 %v184
    %v403 = vpop.f32.mrb[0].mxu0
    %v404 = vadd.f32 0.0, %v403
    %v405 = vpop.f32.mrb[0].mxu0
    %406 = vmatprep.mubr.f32.mxu0 0.0
    %407 = vmatmul.mubr.f32.gmra.mrb[0].mxu0 %v187
    %v408 = vpop.f32.mrb[0].mxu0
    %v409 = vadd.f32 0.0, %v408
    %v410 = vpop.f32.mrb[0].mxu0
    %411 = vmatprep.mubr.f32.mxu0 0.0
    %412 = vmatmul.mubr.f32.gmra.mrb[0].mxu0 %v190
    %v413 = vpop.f32.mrb[0].mxu0
    %v414 = vadd.f32 0.0, %v413
    %v415 = vpop.f32.mrb[0].mxu0
    %416 = vmatprep.mubr.f32.mxu0 0.0
    %417 = vmatmul.mubr.f32.gmra.mrb[0].mxu0 %v193
    %v418 = vpop.f32.mrb[0].mxu0
    %v419 = vadd.f32 0.0, %v418
    %v420 = vpop.f32.mrb[0].mxu0
    %421 = vmatprep.mubr.f32.mxu0 0.0
    %422 = vmatmul.mubr.f32.gmra.mrb[0].mxu0 %v196
    %v423 = vpop.f32.mrb[0].mxu0
    %v424 = vadd.f32 0.0, %v423
    %v425 = vpop.f32.mrb[0].mxu0
    %426 = vdwg.mxu0
    %vm427 = vcmask 80896
    %v429 = vsel %vm427, %v34, 0
    %v432 = vsel %vm427, %v35, 0
    %v435 = vsel %vm427, %v36, 0
    %v438 = vsel %vm427, %v37, 0
    %v441 = vsel %vm427, %v38, 0
    %v444 = vsel %vm427, %v39, 0
    %v447 = vsel %vm427, %v40, 0
    %v450 = vsel %vm427, %v41, 0
    %v453 = vsel %vm427, %v42, 0
    %v456 = vsel %vm427, %v43, 0
    %v459 = vsel %vm427, %v44, 0
    %v462 = vsel %vm427, %v45, 0
    %v465 = vsel %vm427, %v46, 0
    %v468 = vsel %vm427, %v47, 0
    %v471 = vsel %vm427, %v48, 0
    %v474 = vsel %vm427, %v49, 0
    %v477 = vsel %vm427, %v50, 0
    %v480 = vsel %vm427, %v51, 0
    %v483 = vsel %vm427, %v52, 0
    %v486 = vsel %vm427, %v53, 0
    %v489 = vsel %vm427, %v54, 0
    %v492 = vsel %vm427, %v55, 0
    %v495 = vsel %vm427, %v56, 0
    %v498 = vsel %vm427, %v57, 0
    %v501 = vsel %vm427, %v58, 0
    %v504 = vsel %vm427, %v59, 0
    %v507 = vsel %vm427, %v60, 0
    %v510 = vsel %vm427, %v61, 0
    %v513 = vsel %vm427, %v62, 0
    %v516 = vsel %vm427, %v63, 0
    %v519 = vsel %vm427, %v64, 0
    %v522 = vsel %vm427, %v65, 0
    %v525 = vsel %vm198, %v67, 0
    %527 = vmatprep.subr.mxu0 0.0
    %528 = vmatpush1.msra.mxu0 %v66
    %529 = vmatprep.subr.mxu0 0.0
    %530 = vmatpush1.msra.mxu0 %v525
    %531 = vmatprep.subr.mxu0 0.0
    %532 = vmatpush1.msra.mxu0 0.0
    %533 = vmatprep.subr.mxu0 0.0
    %534 = vmatpush1.msra.mxu0 0.0
    %535 = vmatprep.subr.mxu0 0.0
    %536 = vmatpush1.msra.mxu0 0.0
    %537 = vmatprep.subr.mxu0 0.0
    %538 = vmatpush1.msra.mxu0 0.0
    %539 = vmatprep.subr.mxu0 0.0
    %540 = vmatpush1.msra.mxu0 0.0
    %541 = vmatprep.subr.mxu0 0.0
    %542 = vmatpush1.msra.mxu0 0.0
    %543 = vmatprep.subr.mxu0 0.0
    %544 = vmatpush1.msra.mxu0 0.0
    %545 = vmatprep.subr.mxu0 0.0
    %546 = vmatpush1.msra.mxu0 0.0
    %547 = vmatprep.subr.mxu0 0.0
    %548 = vmatpush1.msra.mxu0 0.0
    %549 = vmatprep.subr.mxu0 0.0
    %550 = vmatpush1.msra.mxu0 0.0
    %551 = vmatprep.subr.mxu0 0.0
    %552 = vmatpush1.msra.mxu0 0.0
    %553 = vmatprep.subr.mxu0 0.0
    %554 = vmatpush1.msra.mxu0 0.0
    %555 = vmatprep.subr.mxu0 0.0
    %556 = vmatpush1.msra.mxu0 0.0
    %557 = vmatprep.subr.mxu0 0.0
    %558 = vmatpush1.msra.mxu0 0.0
    %559 = vmatprep.subr.mxu0 0.0
    %560 = vmatpush1.msra.mxu0 0.0
    %561 = vmatprep.subr.mxu0 0.0
    %562 = vmatpush1.msra.mxu0 0.0
    %563 = vmatprep.subr.mxu0 0.0
    %564 = vmatpush1.msra.mxu0 0.0
    %565 = vmatprep.subr.mxu0 0.0
    %566 = vmatpush1.msra.mxu0 0.0
    %567 = vmatprep.subr.mxu0 0.0
    %568 = vmatpush1.msra.mxu0 0.0
    %569 = vmatprep.subr.mxu0 0.0
    %570 = vmatpush1.msra.mxu0 0.0
    %571 = vmatprep.subr.mxu0 0.0
    %572 = vmatpush1.msra.mxu0 0.0
    %573 = vmatprep.subr.mxu0 0.0
    %574 = vmatpush1.msra.mxu0 0.0
    %575 = vmatprep.subr.mxu0 0.0
    %576 = vmatpush1.msra.mxu0 0.0
    %577 = vmatprep.subr.mxu0 0.0
    %578 = vmatpush1.msra.mxu0 0.0
    %579 = vmatprep.subr.mxu0 0.0
    %580 = vmatpush1.msra.mxu0 0.0
    %581 = vmatprep.subr.mxu0 0.0
    %582 = vmatpush1.msra.mxu0 0.0
    %583 = vmatprep.subr.mxu0 0.0
    %584 = vmatpush1.msra.mxu0 0.0
    %585 = vmatprep.subr.mxu0 0.0
    %586 = vmatpush1.msra.mxu0 0.0
    %587 = vmatprep.subr.mxu0 0.0
    %588 = vmatpush1.msra.mxu0 0.0
    %589 = vmatprep.subr.mxu0 0.0
    %590 = vmatpush1.msra.mxu0 0.0
    %591 = vmatprep.mubr.f32.mxu0 0.0
    %592 = vmatmul.mubr.f32.gmra.mrb[0].mxu0 %v429
    %v593 = vpop.f32.mrb[0].mxu0
    %v594 = vadd.f32 %v269, %v593
    %v595 = vpop.f32.mrb[0].mxu0
    %596 = vmatprep.mubr.f32.mxu0 0.0
    %597 = vmatmul.mubr.f32.gmra.mrb[0].mxu0 %v432
    %v598 = vpop.f32.mrb[0].mxu0
    %v599 = vadd.f32 %v274, %v598
    %v600 = vpop.f32.mrb[0].mxu0
    %601 = vmatprep.mubr.f32.mxu0 0.0
    %602 = vmatmul.mubr.f32.gmra.mrb[0].mxu0 %v435
    %v603 = vpop.f32.mrb[0].mxu0
    %v604 = vadd.f32 %v279, %v603
    %v605 = vpop.f32.mrb[0].mxu0
    %606 = vmatprep.mubr.f32.mxu0 0.0
    %607 = vmatmul.mubr.f32.gmra.mrb[0].mxu0 %v438
    %v608 = vpop.f32.mrb[0].mxu0
    %v609 = vadd.f32 %v284, %v608
    %v610 = vpop.f32.mrb[0].mxu0
    %611 = vmatprep.mubr.f32.mxu0 0.0
    %612 = vmatmul.mubr.f32.gmra.mrb[0].mxu0 %v441
    %v613 = vpop.f32.mrb[0].mxu0
    %v614 = vadd.f32 %v289, %v613
    %v615 = vpop.f32.mrb[0].mxu0
    %616 = vmatprep.mubr.f32.mxu0 0.0
    %617 = vmatmul.mubr.f32.gmra.mrb[0].mxu0 %v444
    %v618 = vpop.f32.mrb[0].mxu0
    %v619 = vadd.f32 %v294, %v618
    %v620 = vpop.f32.mrb[0].mxu0
    %621 = vmatprep.mubr.f32.mxu0 0.0
    %622 = vmatmul.mubr.f32.gmra.mrb[0].mxu0 %v447
    %v623 = vpop.f32.mrb[0].mxu0
    %v624 = vadd.f32 %v299, %v623
    %v625 = vpop.f32.mrb[0].mxu0
    %626 = vmatprep.mubr.f32.mxu0 0.0
    %627 = vmatmul.mubr.f32.gmra.mrb[0].mxu0 %v450
    %v628 = vpop.f32.mrb[0].mxu0
    %v629 = vadd.f32 %v304, %v628
    %v630 = vpop.f32.mrb[0].mxu0
    %631 = vmatprep.mubr.f32.mxu0 0.0
    %632 = vmatmul.mubr.f32.gmra.mrb[0].mxu0 %v453
    %v633 = vpop.f32.mrb[0].mxu0
    %v634 = vadd.f32 %v309, %v633
    %v635 = vpop.f32.mrb[0].mxu0
    %636 = vmatprep.mubr.f32.mxu0 0.0
    %637 = vmatmul.mubr.f32.gmra.mrb[0].mxu0 %v456
    %v638 = vpop.f32.mrb[0].mxu0
    %v639 = vadd.f32 %v314, %v638
    %v640 = vpop.f32.mrb[0].mxu0
    %641 = vmatprep.mubr.f32.mxu0 0.0
    %642 = vmatmul.mubr.f32.gmra.mrb[0].mxu0 %v459
    %v643 = vpop.f32.mrb[0].mxu0
    %v644 = vadd.f32 %v319, %v643
    %v645 = vpop.f32.mrb[0].mxu0
    %646 = vmatprep.mubr.f32.mxu0 0.0
    %647 = vmatmul.mubr.f32.gmra.mrb[0].mxu0 %v462
    %v648 = vpop.f32.mrb[0].mxu0
    %v649 = vadd.f32 %v324, %v648
    %v650 = vpop.f32.mrb[0].mxu0
    %651 = vmatprep.mubr.f32.mxu0 0.0
    %652 = vmatmul.mubr.f32.gmra.mrb[0].mxu0 %v465
    %v653 = vpop.f32.mrb[0].mxu0
    %v654 = vadd.f32 %v329, %v653
    %v655 = vpop.f32.mrb[0].mxu0
    %656 = vmatprep.mubr.f32.mxu0 0.0
    %657 = vmatmul.mubr.f32.gmra.mrb[0].mxu0 %v468
    %v658 = vpop.f32.mrb[0].mxu0
    %v659 = vadd.f32 %v334, %v658
    %v660 = vpop.f32.mrb[0].mxu0
    %661 = vmatprep.mubr.f32.mxu0 0.0
    %662 = vmatmul.mubr.f32.gmra.mrb[0].mxu0 %v471
    %v663 = vpop.f32.mrb[0].mxu0
    %v664 = vadd.f32 %v339, %v663
    %v665 = vpop.f32.mrb[0].mxu0
    %666 = vmatprep.mubr.f32.mxu0 0.0
    %667 = vmatmul.mubr.f32.gmra.mrb[0].mxu0 %v474
    %v668 = vpop.f32.mrb[0].mxu0
    %v669 = vadd.f32 %v344, %v668
    %v670 = vpop.f32.mrb[0].mxu0
    %671 = vmatprep.mubr.f32.mxu0 0.0
    %672 = vmatmul.mubr.f32.gmra.mrb[0].mxu0 %v477
    %v673 = vpop.f32.mrb[0].mxu0
    %v674 = vadd.f32 %v349, %v673
    %v675 = vpop.f32.mrb[0].mxu0
    %676 = vmatprep.mubr.f32.mxu0 0.0
    %677 = vmatmul.mubr.f32.gmra.mrb[0].mxu0 %v480
    %v678 = vpop.f32.mrb[0].mxu0
    %v679 = vadd.f32 %v354, %v678
    %v680 = vpop.f32.mrb[0].mxu0
    %681 = vmatprep.mubr.f32.mxu0 0.0
    %682 = vmatmul.mubr.f32.gmra.mrb[0].mxu0 %v483
    %v683 = vpop.f32.mrb[0].mxu0
    %v684 = vadd.f32 %v359, %v683
    %v685 = vpop.f32.mrb[0].mxu0
    %686 = vmatprep.mubr.f32.mxu0 0.0
    %687 = vmatmul.mubr.f32.gmra.mrb[0].mxu0 %v486
    %v688 = vpop.f32.mrb[0].mxu0
    %v689 = vadd.f32 %v364, %v688
    %v690 = vpop.f32.mrb[0].mxu0
    %691 = vmatprep.mubr.f32.mxu0 0.0
    %692 = vmatmul.mubr.f32.gmra.mrb[0].mxu0 %v489
    %v693 = vpop.f32.mrb[0].mxu0
    %v694 = vadd.f32 %v369, %v693
    %v695 = vpop.f32.mrb[0].mxu0
    %696 = vmatprep.mubr.f32.mxu0 0.0
    %697 = vmatmul.mubr.f32.gmra.mrb[0].mxu0 %v492
    %v698 = vpop.f32.mrb[0].mxu0
    %v699 = vadd.f32 %v374, %v698
    %v700 = vpop.f32.mrb[0].mxu0
    %701 = vmatprep.mubr.f32.mxu0 0.0
    %702 = vmatmul.mubr.f32.gmra.mrb[0].mxu0 %v495
    %v703 = vpop.f32.mrb[0].mxu0
    %v704 = vadd.f32 %v379, %v703
    %v705 = vpop.f32.mrb[0].mxu0
    %706 = vmatprep.mubr.f32.mxu0 0.0
    %707 = vmatmul.mubr.f32.gmra.mrb[0].mxu0 %v498
    %v708 = vpop.f32.mrb[0].mxu0
    %v709 = vadd.f32 %v384, %v708
    %v710 = vpop.f32.mrb[0].mxu0
    %711 = vmatprep.mubr.f32.mxu0 0.0
    %712 = vmatmul.mubr.f32.gmra.mrb[0].mxu0 %v501
    %v713 = vpop.f32.mrb[0].mxu0
    %v714 = vadd.f32 %v389, %v713
    %v715 = vpop.f32.mrb[0].mxu0
    %716 = vmatprep.mubr.f32.mxu0 0.0
    %717 = vmatmul.mubr.f32.gmra.mrb[0].mxu0 %v504
    %v718 = vpop.f32.mrb[0].mxu0
    %v719 = vadd.f32 %v394, %v718
    %v720 = vpop.f32.mrb[0].mxu0
    %721 = vmatprep.mubr.f32.mxu0 0.0
    %722 = vmatmul.mubr.f32.gmra.mrb[0].mxu0 %v507
    %v723 = vpop.f32.mrb[0].mxu0
    %v724 = vadd.f32 %v399, %v723
    %v725 = vpop.f32.mrb[0].mxu0
    %726 = vmatprep.mubr.f32.mxu0 0.0
    %727 = vmatmul.mubr.f32.gmra.mrb[0].mxu0 %v510
    %v728 = vpop.f32.mrb[0].mxu0
    %v729 = vadd.f32 %v404, %v728
    %v730 = vpop.f32.mrb[0].mxu0
    %731 = vmatprep.mubr.f32.mxu0 0.0
    %732 = vmatmul.mubr.f32.gmra.mrb[0].mxu0 %v513
    %v733 = vpop.f32.mrb[0].mxu0
    %v734 = vadd.f32 %v409, %v733
    %v735 = vpop.f32.mrb[0].mxu0
    %736 = vmatprep.mubr.f32.mxu0 0.0
    %737 = vmatmul.mubr.f32.gmra.mrb[0].mxu0 %v516
    %v738 = vpop.f32.mrb[0].mxu0
    %v739 = vadd.f32 %v414, %v738
    %v740 = vpop.f32.mrb[0].mxu0
    %741 = vmatprep.mubr.f32.mxu0 0.0
    %742 = vmatmul.mubr.f32.gmra.mrb[0].mxu0 %v519
    %v743 = vpop.f32.mrb[0].mxu0
    %v744 = vadd.f32 %v419, %v743
    %v745 = vpop.f32.mrb[0].mxu0
    %746 = vmatprep.mubr.f32.mxu0 0.0
    %747 = vmatmul.mubr.f32.gmra.mrb[0].mxu0 %v522
    %v748 = vpop.f32.mrb[0].mxu0
    %v749 = vadd.f32 %v424, %v748
    %v750 = vpop.f32.mrb[0].mxu0
    %751 = vdwg.mxu0
    %v752 = vld [vmem:[%s4] sm:$0x1]
    %v754 = vlaneseq
    %v755 = vshrl.u32 %v754, 7
    %v756 = vsub.s32 0, %v755
    %v757 = vrot.slane %v752, %v756
    %v759 = vadd.f32 %v594, %v757
    %v760 = vadd.f32 %v599, %v757
    %v761 = vadd.f32 %v604, %v757
    %v762 = vadd.f32 %v609, %v757
    %v763 = vadd.f32 %v614, %v757
    %v764 = vadd.f32 %v619, %v757
    %v765 = vadd.f32 %v624, %v757
    %v766 = vadd.f32 %v629, %v757
    %v767 = vadd.f32 %v634, %v757
    %v768 = vadd.f32 %v639, %v757
    %v769 = vadd.f32 %v644, %v757
    %v770 = vadd.f32 %v649, %v757
    %v771 = vadd.f32 %v654, %v757
    %v772 = vadd.f32 %v659, %v757
    %v773 = vadd.f32 %v664, %v757
    %v774 = vadd.f32 %v669, %v757
    %v775 = vadd.f32 %v674, %v757
    %v776 = vadd.f32 %v679, %v757
    %v777 = vadd.f32 %v684, %v757
    %v778 = vadd.f32 %v689, %v757
    %v779 = vadd.f32 %v694, %v757
    %v780 = vadd.f32 %v699, %v757
    %v781 = vadd.f32 %v704, %v757
    %v782 = vadd.f32 %v709, %v757
    %v783 = vadd.f32 %v714, %v757
    %v784 = vadd.f32 %v719, %v757
    %v785 = vadd.f32 %v724, %v757
    %v786 = vadd.f32 %v729, %v757
    %v787 = vadd.f32 %v734, %v757
    %v788 = vadd.f32 %v739, %v757
    %v789 = vadd.f32 %v744, %v757
    %v790 = vadd.f32 %v749, %v757
    %v791 = vmax.f32 %v759, 0.0
    %v792 = vmax.f32 %v760, 0.0
    %v793 = vmax.f32 %v761, 0.0
    %v794 = vmax.f32 %v762, 0.0
    %v795 = vmax.f32 %v763, 0.0
    %v796 = vmax.f32 %v764, 0.0
    %v797 = vmax.f32 %v765, 0.0
    %v798 = vmax.f32 %v766, 0.0
    %v799 = vmax.f32 %v767, 0.0
    %v800 = vmax.f32 %v768, 0.0
    %v801 = vmax.f32 %v769, 0.0
    %v802 = vmax.f32 %v770, 0.0
    %v803 = vmax.f32 %v771, 0.0
    %v804 = vmax.f32 %v772, 0.0
    %v805 = vmax.f32 %v773, 0.0
    %v806 = vmax.f32 %v774, 0.0
    %v807 = vmax.f32 %v775, 0.0
    %v808 = vmax.f32 %v776, 0.0
    %v809 = vmax.f32 %v777, 0.0
    %v810 = vmax.f32 %v778, 0.0
    %v811 = vmax.f32 %v779, 0.0
    %v812 = vmax.f32 %v780, 0.0
    %v813 = vmax.f32 %v781, 0.0
    %v814 = vmax.f32 %v782, 0.0
    %v815 = vmax.f32 %v783, 0.0
    %v816 = vmax.f32 %v784, 0.0
    %v817 = vmax.f32 %v785, 0.0
    %v818 = vmax.f32 %v786, 0.0
    %v819 = vmax.f32 %v787, 0.0
    %v820 = vmax.f32 %v788, 0.0
    %v821 = vmax.f32 %v789, 0.0
    %v822 = vmax.f32 %v790, 0.0
    %v823 = vld [vmem:[%s5] sm:$0xff]
    %v824 = vld [vmem:[%s5 + $0x8] sm:$0xff]
    %v825 = vld [vmem:[%s5 + $0x10] sm:$0xff]
    %v826 = vld [vmem:[%s5 + $0x18] sm:$0xff]
    %v827 = vld [vmem:[%s5 + $0x20] sm:$0xff]
    %v828 = vld [vmem:[%s5 + $0x28] sm:$0xff]
    %v829 = vld [vmem:[%s5 + $0x30] sm:$0xff]
    %v830 = vld [vmem:[%s5 + $0x38] sm:$0xff]
    %v831 = vld [vmem:[%s5 + $0x40] sm:$0xff]
    %v832 = vld [vmem:[%s5 + $0x48] sm:$0xff]
    %v833 = vld [vmem:[%s5 + $0x50] sm:$0xff]
    %v834 = vld [vmem:[%s5 + $0x58] sm:$0xff]
    %v835 = vld [vmem:[%s5 + $0x60] sm:$0xff]
    %v836 = vld [vmem:[%s5 + $0x68] sm:$0xff]
    %v837 = vld [vmem:[%s5 + $0x70] sm:$0xff]
    %v838 = vld [vmem:[%s5 + $0x78] sm:$0xff]
    %v839 = vld [vmem:[%s6] sm:$0x1]
    %v841 = vlaneseq
    %v842 = vshrl.u32 %v841, 7
    %v843 = vsub.s32 0, %v842
    %v844 = vrot.slane %v839, %v843
    %846 = vmatprep.subr.mxu0 0.0
    %847 = vmatpush1.msra.mxu0 %v823
    %848 = vmatprep.subr.mxu0 0.0
    %849 = vmatpush1.msra.mxu0 %v824
    %850 = vmatprep.subr.mxu0 0.0
    %851 = vmatpush1.msra.mxu0 %v825
    %852 = vmatprep.subr.mxu0 0.0
    %853 = vmatpush1.msra.mxu0 %v826
    %854 = vmatprep.subr.mxu0 0.0
    %855 = vmatpush1.msra.mxu0 %v827
    %856 = vmatprep.subr.mxu0 0.0
    %857 = vmatpush1.msra.mxu0 %v828
    %858 = vmatprep.subr.mxu0 0.0
    %859 = vmatpush1.msra.mxu0 %v829
    %860 = vmatprep.subr.mxu0 0.0
    %861 = vmatpush1.msra.mxu0 %v830
    %862 = vmatprep.subr.mxu0 0.0
    %863 = vmatpush1.msra.mxu0 %v831
    %864 = vmatprep.subr.mxu0 0.0
    %865 = vmatpush1.msra.mxu0 %v832
    %866 = vmatprep.subr.mxu0 0.0
    %867 = vmatpush1.msra.mxu0 %v833
    %868 = vmatprep.subr.mxu0 0.0
    %869 = vmatpush1.msra.mxu0 %v834
    %870 = vmatprep.subr.mxu0 0.0
    %871 = vmatpush1.msra.mxu0 %v835
    %872 = vmatprep.subr.mxu0 0.0
    %873 = vmatpush1.msra.mxu0 %v836
    %874 = vmatprep.subr.mxu0 0.0
    %875 = vmatpush1.msra.mxu0 %v837
    %876 = vmatprep.subr.mxu0 0.0
    %877 = vmatpush1.msra.mxu0 %v838
    %878 = vmatprep.subr.mxu0 0.0
    %879 = vmatpush1.msra.mxu0 0.0
    %880 = vmatprep.subr.mxu0 0.0
    %881 = vmatpush1.msra.mxu0 0.0
    %882 = vmatprep.subr.mxu0 0.0
    %883 = vmatpush1.msra.mxu0 0.0
    %884 = vmatprep.subr.mxu0 0.0
    %885 = vmatpush1.msra.mxu0 0.0
    %886 = vmatprep.subr.mxu0 0.0
    %887 = vmatpush1.msra.mxu0 0.0
    %888 = vmatprep.subr.mxu0 0.0
    %889 = vmatpush1.msra.mxu0 0.0
    %890 = vmatprep.subr.mxu0 0.0
    %891 = vmatpush1.msra.mxu0 0.0
    %892 = vmatprep.subr.mxu0 0.0
    %893 = vmatpush1.msra.mxu0 0.0
    %894 = vmatprep.subr.mxu0 0.0
    %895 = vmatpush1.msra.mxu0 0.0
    %896 = vmatprep.subr.mxu0 0.0
    %897 = vmatpush1.msra.mxu0 0.0
    %898 = vmatprep.subr.mxu0 0.0
    %899 = vmatpush1.msra.mxu0 0.0
    %900 = vmatprep.subr.mxu0 0.0
    %901 = vmatpush1.msra.mxu0 0.0
    %902 = vmatprep.subr.mxu0 0.0
    %903 = vmatpush1.msra.mxu0 0.0
    %904 = vmatprep.subr.mxu0 0.0
    %905 = vmatpush1.msra.mxu0 0.0
    %906 = vmatprep.subr.mxu0 0.0
    %907 = vmatpush1.msra.mxu0 0.0
    %908 = vmatprep.subr.mxu0 0.0
    %909 = vmatpush1.msra.mxu0 0.0
    %910 = vmatprep.mubr.f32.mxu0 0.0
    %911 = vmatmul.mubr.f32.gmra.mrb[0].mxu0 %v791
    %v912 = vpop.f32.mrb[0].mxu0
    %v913 = vadd.f32 %v844, %v912
    %v914 = vpop.f32.mrb[0].mxu0
    %915 = vmatprep.mubr.f32.mxu0 0.0
    %916 = vmatmul.mubr.f32.gmra.mrb[0].mxu0 %v792
    %v917 = vpop.f32.mrb[0].mxu0
    %v918 = vadd.f32 %v844, %v917
    %v919 = vpop.f32.mrb[0].mxu0
    %920 = vmatprep.mubr.f32.mxu0 0.0
    %921 = vmatmul.mubr.f32.gmra.mrb[0].mxu0 %v793
    %v922 = vpop.f32.mrb[0].mxu0
    %v923 = vadd.f32 %v844, %v922
    %v924 = vpop.f32.mrb[0].mxu0
    %925 = vmatprep.mubr.f32.mxu0 0.0
    %926 = vmatmul.mubr.f32.gmra.mrb[0].mxu0 %v794
    %v927 = vpop.f32.mrb[0].mxu0
    %v928 = vadd.f32 %v844, %v927
    %v929 = vpop.f32.mrb[0].mxu0
    %930 = vmatprep.mubr.f32.mxu0 0.0
    %931 = vmatmul.mubr.f32.gmra.mrb[0].mxu0 %v795
    %v932 = vpop.f32.mrb[0].mxu0
    %v933 = vadd.f32 %v844, %v932
    %v934 = vpop.f32.mrb[0].mxu0
    %935 = vmatprep.mubr.f32.mxu0 0.0
    %936 = vmatmul.mubr.f32.gmra.mrb[0].mxu0 %v796
    %v937 = vpop.f32.mrb[0].mxu0
    %v938 = vadd.f32 %v844, %v937
    %v939 = vpop.f32.mrb[0].mxu0
    %940 = vmatprep.mubr.f32.mxu0 0.0
    %941 = vmatmul.mubr.f32.gmra.mrb[0].mxu0 %v797
    %v942 = vpop.f32.mrb[0].mxu0
    %v943 = vadd.f32 %v844, %v942
    %v944 = vpop.f32.mrb[0].mxu0
    %945 = vmatprep.mubr.f32.mxu0 0.0
    %946 = vmatmul.mubr.f32.gmra.mrb[0].mxu0 %v798
    %v947 = vpop.f32.mrb[0].mxu0
    %v948 = vadd.f32 %v844, %v947
    %v949 = vpop.f32.mrb[0].mxu0
    %950 = vmatprep.mubr.f32.mxu0 0.0
    %951 = vmatmul.mubr.f32.gmra.mrb[0].mxu0 %v799
    %v952 = vpop.f32.mrb[0].mxu0
    %v953 = vadd.f32 %v844, %v952
    %v954 = vpop.f32.mrb[0].mxu0
    %955 = vmatprep.mubr.f32.mxu0 0.0
    %956 = vmatmul.mubr.f32.gmra.mrb[0].mxu0 %v800
    %v957 = vpop.f32.mrb[0].mxu0
    %v958 = vadd.f32 %v844, %v957
    %v959 = vpop.f32.mrb[0].mxu0
    %960 = vmatprep.mubr.f32.mxu0 0.0
    %961 = vmatmul.mubr.f32.gmra.mrb[0].mxu0 %v801
    %v962 = vpop.f32.mrb[0].mxu0
    %v963 = vadd.f32 %v844, %v962
    %v964 = vpop.f32.mrb[0].mxu0
    %965 = vmatprep.mubr.f32.mxu0 0.0
    %966 = vmatmul.mubr.f32.gmra.mrb[0].mxu0 %v802
    %v967 = vpop.f32.mrb[0].mxu0
    %v968 = vadd.f32 %v844, %v967
    %v969 = vpop.f32.mrb[0].mxu0
    %970 = vmatprep.mubr.f32.mxu0 0.0
    %971 = vmatmul.mubr.f32.gmra.mrb[0].mxu0 %v803
    %v972 = vpop.f32.mrb[0].mxu0
    %v973 = vadd.f32 %v844, %v972
    %v974 = vpop.f32.mrb[0].mxu0
    %975 = vmatprep.mubr.f32.mxu0 0.0
    %976 = vmatmul.mubr.f32.gmra.mrb[0].mxu0 %v804
    %v977 = vpop.f32.mrb[0].mxu0
    %v978 = vadd.f32 %v844, %v977
    %v979 = vpop.f32.mrb[0].mxu0
    %980 = vmatprep.mubr.f32.mxu0 0.0
    %981 = vmatmul.mubr.f32.gmra.mrb[0].mxu0 %v805
    %v982 = vpop.f32.mrb[0].mxu0
    %v983 = vadd.f32 %v844, %v982
    %v984 = vpop.f32.mrb[0].mxu0
    %985 = vmatprep.mubr.f32.mxu0 0.0
    %986 = vmatmul.mubr.f32.gmra.mrb[0].mxu0 %v806
    %v987 = vpop.f32.mrb[0].mxu0
    %v988 = vadd.f32 %v844, %v987
    %v989 = vpop.f32.mrb[0].mxu0
    %990 = vmatprep.mubr.f32.mxu0 0.0
    %991 = vmatmul.mubr.f32.gmra.mrb[0].mxu0 %v807
    %v992 = vpop.f32.mrb[0].mxu0
    %v993 = vadd.f32 %v844, %v992
    %v994 = vpop.f32.mrb[0].mxu0
    %995 = vmatprep.mubr.f32.mxu0 0.0
    %996 = vmatmul.mubr.f32.gmra.mrb[0].mxu0 %v808
    %v997 = vpop.f32.mrb[0].mxu0
    %v998 = vadd.f32 %v844, %v997
    %v999 = vpop.f32.mrb[0].mxu0
    %1000 = vmatprep.mubr.f32.mxu0 0.0
    %1001 = vmatmul.mubr.f32.gmra.mrb[0].mxu0 %v809
    %v1002 = vpop.f32.mrb[0].mxu0
    %v1003 = vadd.f32 %v844, %v1002
    %v1004 = vpop.f32.mrb[0].mxu0
    %1005 = vmatprep.mubr.f32.mxu0 0.0
    %1006 = vmatmul.mubr.f32.gmra.mrb[0].mxu0 %v810
    %v1007 = vpop.f32.mrb[0].mxu0
    %v1008 = vadd.f32 %v844, %v1007
    %v1009 = vpop.f32.mrb[0].mxu0
    %1010 = vmatprep.mubr.f32.mxu0 0.0
    %1011 = vmatmul.mubr.f32.gmra.mrb[0].mxu0 %v811
    %v1012 = vpop.f32.mrb[0].mxu0
    %v1013 = vadd.f32 %v844, %v1012
    %v1014 = vpop.f32.mrb[0].mxu0
    %1015 = vmatprep.mubr.f32.mxu0 0.0
    %1016 = vmatmul.mubr.f32.gmra.mrb[0].mxu0 %v812
    %v1017 = vpop.f32.mrb[0].mxu0
    %v1018 = vadd.f32 %v844, %v1017
    %v1019 = vpop.f32.mrb[0].mxu0
    %1020 = vmatprep.mubr.f32.mxu0 0.0
    %1021 = vmatmul.mubr.f32.gmra.mrb[0].mxu0 %v813
    %v1022 = vpop.f32.mrb[0].mxu0
    %v1023 = vadd.f32 %v844, %v1022
    %v1024 = vpop.f32.mrb[0].mxu0
    %1025 = vmatprep.mubr.f32.mxu0 0.0
    %1026 = vmatmul.mubr.f32.gmra.mrb[0].mxu0 %v814
    %v1027 = vpop.f32.mrb[0].mxu0
    %v1028 = vadd.f32 %v844, %v1027
    %v1029 = vpop.f32.mrb[0].mxu0
    %1030 = vmatprep.mubr.f32.mxu0 0.0
    %1031 = vmatmul.mubr.f32.gmra.mrb[0].mxu0 %v815
    %v1032 = vpop.f32.mrb[0].mxu0
    %v1033 = vadd.f32 %v844, %v1032
    %v1034 = vpop.f32.mrb[0].mxu0
    %1035 = vmatprep.mubr.f32.mxu0 0.0
    %1036 = vmatmul.mubr.f32.gmra.mrb[0].mxu0 %v816
    %v1037 = vpop.f32.mrb[0].mxu0
    %v1038 = vadd.f32 %v844, %v1037
    %v1039 = vpop.f32.mrb[0].mxu0
    %1040 = vmatprep.mubr.f32.mxu0 0.0
    %1041 = vmatmul.mubr.f32.gmra.mrb[0].mxu0 %v817
    %v1042 = vpop.f32.mrb[0].mxu0
    %v1043 = vadd.f32 %v844, %v1042
    %v1044 = vpop.f32.mrb[0].mxu0
    %1045 = vmatprep.mubr.f32.mxu0 0.0
    %1046 = vmatmul.mubr.f32.gmra.mrb[0].mxu0 %v818
    %v1047 = vpop.f32.mrb[0].mxu0
    %v1048 = vadd.f32 %v844, %v1047
    %v1049 = vpop.f32.mrb[0].mxu0
    %1050 = vmatprep.mubr.f32.mxu0 0.0
    %1051 = vmatmul.mubr.f32.gmra.mrb[0].mxu0 %v819
    %v1052 = vpop.f32.mrb[0].mxu0
    %v1053 = vadd.f32 %v844, %v1052
    %v1054 = vpop.f32.mrb[0].mxu0
    %1055 = vmatprep.mubr.f32.mxu0 0.0
    %1056 = vmatmul.mubr.f32.gmra.mrb[0].mxu0 %v820
    %v1057 = vpop.f32.mrb[0].mxu0
    %v1058 = vadd.f32 %v844, %v1057
    %v1059 = vpop.f32.mrb[0].mxu0
    %1060 = vmatprep.mubr.f32.mxu0 0.0
    %1061 = vmatmul.mubr.f32.gmra.mrb[0].mxu0 %v821
    %v1062 = vpop.f32.mrb[0].mxu0
    %v1063 = vadd.f32 %v844, %v1062
    %v1064 = vpop.f32.mrb[0].mxu0
    %1065 = vmatprep.mubr.f32.mxu0 0.0
    %1066 = vmatmul.mubr.f32.gmra.mrb[0].mxu0 %v822
    %v1067 = vpop.f32.mrb[0].mxu0
    %v1068 = vadd.f32 %v844, %v1067
    %v1069 = vpop.f32.mrb[0].mxu0
    %1070 = vdwg.mxu0
    %v1071 = vmax.f32 %v913, 0.0
    %v1072 = vmax.f32 %v918, 0.0
    %v1073 = vmax.f32 %v923, 0.0
    %v1074 = vmax.f32 %v928, 0.0
    %v1075 = vmax.f32 %v933, 0.0
    %v1076 = vmax.f32 %v938, 0.0
    %v1077 = vmax.f32 %v943, 0.0
    %v1078 = vmax.f32 %v948, 0.0
    %v1079 = vmax.f32 %v953, 0.0
    %v1080 = vmax.f32 %v958, 0.0
    %v1081 = vmax.f32 %v963, 0.0
    %v1082 = vmax.f32 %v968, 0.0
    %v1083 = vmax.f32 %v973, 0.0
    %v1084 = vmax.f32 %v978, 0.0
    %v1085 = vmax.f32 %v983, 0.0
    %v1086 = vmax.f32 %v988, 0.0
    %v1087 = vmax.f32 %v993, 0.0
    %v1088 = vmax.f32 %v998, 0.0
    %v1089 = vmax.f32 %v1003, 0.0
    %v1090 = vmax.f32 %v1008, 0.0
    %v1091 = vmax.f32 %v1013, 0.0
    %v1092 = vmax.f32 %v1018, 0.0
    %v1093 = vmax.f32 %v1023, 0.0
    %v1094 = vmax.f32 %v1028, 0.0
    %v1095 = vmax.f32 %v1033, 0.0
    %v1096 = vmax.f32 %v1038, 0.0
    %v1097 = vmax.f32 %v1043, 0.0
    %v1098 = vmax.f32 %v1048, 0.0
    %v1099 = vmax.f32 %v1053, 0.0
    %v1100 = vmax.f32 %v1058, 0.0
    %v1101 = vmax.f32 %v1063, 0.0
    %v1102 = vmax.f32 %v1068, 0.0
    %v1103 = vld [vmem:[%s7] sm:$0xff]
    %1104 = vmatprep.subr.mxu0 0.0
    %1105 = vmatpush1.xpose.msra.mxu0 %v1071
    %1106 = vmatprep.subr.mxu0 0.0
    %1107 = vmatpush1.xpose.msra.mxu0 %v1072
    %1108 = vmatprep.subr.mxu0 0.0
    %1109 = vmatpush1.xpose.msra.mxu0 %v1073
    %1110 = vmatprep.subr.mxu0 0.0
    %1111 = vmatpush1.xpose.msra.mxu0 %v1074
    %1112 = vmatprep.subr.mxu0 0.0
    %1113 = vmatpush1.xpose.msra.mxu0 %v1075
    %1114 = vmatprep.subr.mxu0 0.0
    %1115 = vmatpush1.xpose.msra.mxu0 %v1076
    %1116 = vmatprep.subr.mxu0 0.0
    %1117 = vmatpush1.xpose.msra.mxu0 %v1077
    %1118 = vmatprep.subr.mxu0 0.0
    %1119 = vmatpush1.xpose.msra.mxu0 %v1078
    %1120 = vmatprep.subr.mxu0 0.0
    %1121 = vmatpush1.xpose.msra.mxu0 %v1079
    %1122 = vmatprep.subr.mxu0 0.0
    %1123 = vmatpush1.xpose.msra.mxu0 %v1080
    %1124 = vmatprep.subr.mxu0 0.0
    %1125 = vmatpush1.xpose.msra.mxu0 %v1081
    %1126 = vmatprep.subr.mxu0 0.0
    %1127 = vmatpush1.xpose.msra.mxu0 %v1082
    %1128 = vmatprep.subr.mxu0 0.0
    %1129 = vmatpush1.xpose.msra.mxu0 %v1083
    %1130 = vmatprep.subr.mxu0 0.0
    %1131 = vmatpush1.xpose.msra.mxu0 %v1084
    %1132 = vmatprep.subr.mxu0 0.0
    %1133 = vmatpush1.xpose.msra.mxu0 %v1085
    %1134 = vmatprep.subr.mxu0 0.0
    %1135 = vmatpush1.xpose.msra.mxu0 %v1086
    %1136 = vmatprep.subr.mxu0 0.0
    %1137 = vmatpush1.xpose.msra.mxu0 %v1087
    %1138 = vmatprep.subr.mxu0 0.0
    %1139 = vmatpush1.xpose.msra.mxu0 %v1088
    %1140 = vmatprep.subr.mxu0 0.0
    %1141 = vmatpush1.xpose.msra.mxu0 %v1089
    %1142 = vmatprep.subr.mxu0 0.0
    %1143 = vmatpush1.xpose.msra.mxu0 %v1090
    %1144 = vmatprep.subr.mxu0 0.0
    %1145 = vmatpush1.xpose.msra.mxu0 %v1091
    %1146 = vmatprep.subr.mxu0 0.0
    %1147 = vmatpush1.xpose.msra.mxu0 %v1092
    %1148 = vmatprep.subr.mxu0 0.0
    %1149 = vmatpush1.xpose.msra.mxu0 %v1093
    %1150 = vmatprep.subr.mxu0 0.0
    %1151 = vmatpush1.xpose.msra.mxu0 %v1094
    %1152 = vmatprep.subr.mxu0 0.0
    %1153 = vmatpush1.xpose.msra.mxu0 %v1095
    %1154 = vmatprep.subr.mxu0 0.0
    %1155 = vmatpush1.xpose.msra.mxu0 %v1096
    %1156 = vmatprep.subr.mxu0 0.0
    %1157 = vmatpush1.xpose.msra.mxu0 %v1097
    %1158 = vmatprep.subr.mxu0 0.0
    %1159 = vmatpush1.xpose.msra.mxu0 %v1098
    %1160 = vmatprep.subr.mxu0 0.0
    %1161 = vmatpush1.xpose.msra.mxu0 %v1099
    %1162 = vmatprep.subr.mxu0 0.0
    %1163 = vmatpush1.xpose.msra.mxu0 %v1100
    %1164 = vmatprep.subr.mxu0 0.0
    %1165 = vmatpush1.xpose.msra.mxu0 %v1101
    %1166 = vmatprep.subr.mxu0 0.0
    %1167 = vmatpush1.xpose.msra.mxu0 %v1102
    %1168 = vmatprep.mubr.f32.mxu0 0.0
    %1169 = vmatmul.mubr.f32.gmra.mrb[0].mxu0 %v1103
    %v1170 = vpop.f32.mrb[0].mxu0
    %v1171 = vadd.f32 0.0, %v1170
    %v1172 = vpop.f32.mrb[0].mxu0
    %v1173 = vadd.f32 0.0, %v1172
    %1174 = vdwg.mxu0
    %s1175 = sld [smem:[#allocation2]]
    %v1176 = vstv %s1175
    %v1177 = vadd.f32 %v1171, %v1176
    %v1178 = vadd.f32 %v1173, %v1176
    %v1179 = vtanh.pop %v1177
    %v1180 = vtanh.pop %v1178
    %v1183 = vcombine.low %v1179, %v1180
    %v1185 = vunpack.c.l.s4 1966171168
    %v1186 = vunpack.c.0.s8 %v1185
    %v1187 = vlaneseq
    %v1188 = vshrl.u32 %v1187, 7
    %v1189 = vsub.s32 %v1186, %v1188
    %v1190 = vrot.slane %v1183, %v1189
    %v1192 = vunpack.c.l.s4 1966171168
    %v1193 = vunpack.c.0.s8 %v1192
    %v1194 = vlaneseq
    %v1195 = vshrl.u32 %v1194, 7
    %v1196 = vsub.s32 %v1193, %v1195
    %v1197 = vrot.slane %v1190, %v1196
    %v1199 = vlaneseq
    %vm1200 = vcmp.ge.s32.totalorder %v1199, 0
    %vm1201 = vcmp.lt.s32.totalorder %v1199, 256
    %vm1202 = vmand %vm1200, %vm1201
    %1203 = vst.msk [vmem:[#allocation3] sm:$0x3] %vm1202, %v1197
    // Predicated region
    $region38: #{tpu_custom_call.1} parent=1 // pred_check
      _
    $region39: #{tpu_custom_call.1} parent=1 // pred_check_branch
      %1205 = sbr.rel (0) target = $region41
    $region40: #{tpu_custom_call.1} parent=1 // pred_region
      %s1207 = ssub.s32 32, 32
      %1208 = vsyncadd [#allocation4], %s1207
      %s1210 = sshll.u32 [#allocation3], 4
      %s1211 = int_to_ptr.vmem [resolvable:$true] %s1210
      %1213 = dma.vmem_to_hbm [thread:$0]  %s1211, 32, %s9, [#allocation4]
    $region41: #{tpu_custom_call.1} parent=1 // pred_fallthru
      _
    // Predicated region
    $region42: #{tpu_custom_call.1} parent=1 // pred_check
      _
    $region43: #{tpu_custom_call.1} parent=1 // pred_check_branch
      %1215 = sbr.rel (0) target = $region45
    $region44: #{tpu_custom_call.1} parent=1 // pred_region
      %1216 = dma.done [#allocation4], 32
    $region45: #{tpu_custom_call.1} parent=1 // pred_fallthru
      _
    %1217 = vsyncpa [#allocation4], 1

</llo_original>
